<compile_context>
chip_gen: v7x
topology: tpu7x:2x2x1
jax: 0.10.0
libtpu: 0.0.40
codegen_flags: <defaults>
</compile_context>

<pallas_src>
import jax
import jax.numpy as jnp
import numpy as np
from jax.experimental import pallas as pl
from jax.experimental.pallas import tpu as pltpu


# ----------------------------- Pallas kernel --------------------------------

def dqn_fused_kernel(p1_ref, p2_ref, x3_ref,
                     wbd1_ref, bbd1_ref, wbd2_ref, bbd2_ref,
                     wc1_ref, wc2_ref, wlast_ref, bcat_ref, o_ref):
    # conv11 + bias + ReLU; features come out in (patch-major, oc-minor) order.
    f1 = jnp.maximum(
        jnp.dot(p1_ref[...], wbd1_ref[...], preferred_element_type=jnp.float32)
        + bbd1_ref[...], 0.0)                                    # (B, P1*16)
    # conv21 + bias + ReLU
    f2 = jnp.maximum(
        jnp.dot(p2_ref[...], wbd2_ref[...], preferred_element_type=jnp.float32)
        + bbd2_ref[...], 0.0)                                    # (B, P2*16)

    # Both heads at once: shared activation, column-stacked (F, 2A) weights.
    out = (jnp.dot(f1, wc1_ref[...], preferred_element_type=jnp.float32)
           + jnp.dot(f2, wc2_ref[...], preferred_element_type=jnp.float32)
           + bcat_ref[...])                                      # (B, 2A)
    # Rank-1 scalar (x3/4) correction on the VPU; the /4 is folded into wlast.
    out = out + x3_ref[:, 0:1] * wlast_ref[0:1, :] \
              + x3_ref[:, 1:2] * wlast_ref[1:2, :]
    o_ref[...] = out


def _vmem():
    return pl.BlockSpec(memory_space=pltpu.MemorySpace.VMEM)


# ------------------------------ JAX glue -------------------------------------

def im2col_2x2_flat(x):
    """x: (B, C, H, W) NCHW -> (B, P*C*4) with column index p*(C*4) + c*4 + di*2 + dj,
    where p = i*(W-1) + j (patch-major rows per batch)."""
    B, C, H, W = x.shape
    nh, nw = H - 1, W - 1
    cols = [x[:, :, di:di + nh, dj:dj + nw] for di in range(2) for dj in range(2)]
    patches = jnp.stack(cols, axis=2)              # (B, C, 4, nh, nw)
    patches = patches.transpose(0, 3, 4, 1, 2)     # (B, nh, nw, C, 4)
    return patches.reshape(B, nh * nw * C * 4)


def init_params(key, in_channels, fovea_patch_num, periphery_patch_num, n_actions=14):
    """PyTorch-layout parameters (same init scheme as nn.Conv2d / nn.Linear)."""
    num_f = fovea_patch_num - 1
    num_p = periphery_patch_num - 1
    feat = (num_p * num_p + num_f * num_f) * 16 + 1
    ks = jax.random.split(key, 8)

    def u(k, shape, fan_in):
        bound = 1.0 / float(np.sqrt(fan_in))
        return jax.random.uniform(k, shape, jnp.float32, -bound, bound)

    return dict(
        conv11_w=u(ks[0], (16, in_channels[0], 2, 2), in_channels[0] * 4),
        conv11_b=u(ks[1], (16,), in_channels[0] * 4),
        conv21_w=u(ks[2], (16, in_channels[1], 2, 2), in_channels[1] * 4),
        conv21_b=u(ks[3], (16,), in_channels[1] * 4),
        head1_w=u(ks[4], (n_actions, feat), feat),
        head1_b=u(ks[5], (n_actions,), feat),
        head2_w=u(ks[6], (n_actions, feat), feat),
        head2_b=u(ks[7], (n_actions,), feat),
    )


def prepare_params(params, fovea_patch_num, periphery_patch_num):
    """One-time restructuring of PyTorch-layout weights into kernel layout."""
    nf = fovea_patch_num - 1
    npp = periphery_patch_num - 1
    P1, P2 = nf * nf, npp * npp
    C1 = params["conv11_w"].shape[1]
    C2 = params["conv21_w"].shape[1]
    A = params["head1_w"].shape[0]

    # Conv matrices in PyTorch flatten order (c*4 + di*2 + dj), then block-diag over
    # patches so one matmul produces (patch-major, oc-minor) features.
    w1_2d = params["conv11_w"].reshape(16, C1 * 4).T              # (C1*4, 16)
    w2_2d = params["conv21_w"].reshape(16, C2 * 4).T              # (C2*4, 16)
    wbd1 = jnp.kron(jnp.eye(P1, dtype=jnp.float32), w1_2d)        # (P1*C1*4, P1*16)
    wbd2 = jnp.kron(jnp.eye(P2, dtype=jnp.float32), w2_2d)        # (P2*C2*4, P2*16)
    bbd1 = jnp.tile(params["conv11_b"], P1).reshape(1, P1 * 16)
    bbd2 = jnp.tile(params["conv21_b"], P2).reshape(1, P2 * 16)

    # Head weights: permute rows from PyTorch order (oc-major: oc*P + p) to the
    # kernel's feature order (p*16 + oc), split per conv block, stack both heads.
    def split_head(hw):
        blk1 = hw[:, :16 * P1].reshape(A, 16, P1).transpose(2, 1, 0).reshape(P1 * 16, A)
        blk2 = hw[:, 16 * P1:16 * (P1 + P2)].reshape(A, 16, P2).transpose(2, 1, 0) \
                 .reshape(P2 * 16, A)
        last = hw[:, 16 * (P1 + P2)]                              # (A,)
        return blk1, blk2, last

    h1b1, h1b2, h1last = split_head(params["head1_w"])
    h2b1, h2b2, h2last = split_head(params["head2_w"])

    wc1 = jnp.concatenate([h1b1, h2b1], axis=1)                   # (P1*16, 2A)
    wc2 = jnp.concatenate([h1b2, h2b2], axis=1)                   # (P2*16, 2A)
    # Rank-1 scalar weights: /4 folded in; head1 uses x3[:,0], head2 uses x3[:,1].
    wlast = jnp.zeros((2, 2 * A), jnp.float32)
    wlast = wlast.at[0, :A].set(h1last * 0.25)
    wlast = wlast.at[1, A:].set(h2last * 0.25)
    bcat = jnp.concatenate([params["head1_b"], params["head2_b"]]).reshape(1, 2 * A)

    return dict(wbd1=wbd1, bbd1=bbd1, wbd2=wbd2, bbd2=bbd2,
                wc1=wc1, wc2=wc2, wlast=wlast, bcat=bcat)


@jax.jit
def dqn_track_forward(prepped, x1, x2, x3):
    x1 = x1.astype(jnp.float32)
    x2 = x2.astype(jnp.float32)
    x3 = x3.astype(jnp.float32)

    p1 = im2col_2x2_flat(x1)          # (B, P1*C1*4)
    p2 = im2col_2x2_flat(x2)          # (B, P2*C2*4)
    B = x1.shape[0]
    A2 = prepped["bcat"].shape[1]

    out = pl.pallas_call(
        dqn_fused_kernel,
        out_shape=jax.ShapeDtypeStruct((B, A2), jnp.float32),
        in_specs=[_vmem()] * 11,
        out_specs=_vmem(),
    )(p1, p2, x3,
      prepped["wbd1"], prepped["bbd1"], prepped["wbd2"], prepped["bbd2"],
      prepped["wc1"], prepped["wc2"], prepped["wlast"], prepped["bcat"])

    A = A2 // 2
    return out[:, :A], out[:, A:]


# --------------------------- pure-JAX reference ------------------------------

def reference_forward(params, x1, x2, x3):
    x1 = x1.astype(jnp.float32)
    x2 = x2.astype(jnp.float32)
    x3 = x3.astype(jnp.float32)
    dn = ('NCHW', 'OIHW', 'NCHW')
    y1 = jax.lax.conv_general_dilated(x1, params["conv11_w"], (1, 1), 'VALID',
                                      dimension_numbers=dn)
    y1 = jax.nn.relu(y1 + params["conv11_b"][None, :, None, None]).reshape(x1.shape[0], -1)
    y2 = jax.lax.conv_general_dilated(x2, params["conv21_w"], (1, 1), 'VALID',
                                      dimension_numbers=dn)
    y2 = jax.nn.relu(y2 + params["conv21_b"][None, :, None, None]).reshape(x2.shape[0], -1)
    x = jnp.concatenate([y1, y2], axis=1)
    x3s = x3 / 4.0
    x4 = jnp.concatenate([x, x3s[:, 0:1]], axis=1)
    x5 = jnp.concatenate([x, x3s[:, 1:2]], axis=1)
    h1 = x4 @ params["head1_w"].T + params["head1_b"]
    h2 = x5 @ params["head2_w"].T + params["head2_b"]
    return h1, h2


if __name__ == "__main__":
    key = jax.random.PRNGKey(0)
    in_channels = (4, 4)
    fovea_patch_num = 4       # -> 3x3 conv output
    periphery_patch_num = 6   # -> 5x5 conv output
    B = 2

    kp, k1, k2, k3 = jax.random.split(key, 4)
    params = init_params(kp, in_channels, fovea_patch_num, periphery_patch_num)
    prepped = prepare_params(params, fovea_patch_num, periphery_patch_num)

    x1 = jax.random.normal(k1, (B, in_channels[0], fovea_patch_num, fovea_patch_num),
                           jnp.float32)
    x2 = jax.random.normal(k2, (B, in_channels[1], periphery_patch_num, periphery_patch_num),
                           jnp.float32)
    x3 = jax.random.uniform(k3, (B, 2), jnp.float32, 0.0, 4.0)

    h1, h2 = dqn_track_forward(prepped, x1, x2, x3)
    jax.block_until_ready((h1, h2))

    r1, r2 = reference_forward(params, x1, x2, x3)
    np.testing.assert_allclose(np.asarray(h1), np.asarray(r1), rtol=1e-4, atol=1e-4)
    np.testing.assert_allclose(np.asarray(h2), np.asarray(r2), rtol=1e-4, atol=1e-4)
    print("KERNEL_OK")
</pallas_src>

<mosaic_0001>
module attributes {stable_mosaic.version = 11 : i64} {
  func.func @dqn_fused_kernel(%arg0: memref<2x144xf32, #tpu.memory_space<vmem>>, %arg1: memref<2x400xf32, #tpu.memory_space<vmem>>, %arg2: memref<2x2xf32, #tpu.memory_space<vmem>>, %arg3: memref<144x144xf32, #tpu.memory_space<vmem>>, %arg4: memref<1x144xf32, #tpu.memory_space<vmem>>, %arg5: memref<400x400xf32, #tpu.memory_space<vmem>>, %arg6: memref<1x400xf32, #tpu.memory_space<vmem>>, %arg7: memref<144x28xf32, #tpu.memory_space<vmem>>, %arg8: memref<400x28xf32, #tpu.memory_space<vmem>>, %arg9: memref<2x28xf32, #tpu.memory_space<vmem>>, %arg10: memref<1x28xf32, #tpu.memory_space<vmem>>, %arg11: memref<2x28xf32, #tpu.memory_space<vmem>>) attributes {dimension_semantics = [], scalar_prefetch = 0 : i64, scratch_operands = 0 : i64, tpu.core_type = #tpu.core_type<tc>} {
    %c0 = arith.constant 0 : index
    %c0_0 = arith.constant 0 : index
    %0 = vector.load %arg0[%c0, %c0_0] : memref<2x144xf32, #tpu.memory_space<vmem>>, vector<2x144xf32>
    %c0_1 = arith.constant 0 : index
    %c0_2 = arith.constant 0 : index
    %1 = vector.load %arg3[%c0_1, %c0_2] : memref<144x144xf32, #tpu.memory_space<vmem>>, vector<144x144xf32>
    %cst = arith.constant dense<0.000000e+00> : vector<2x144xf32>
    %2 = tpu.matmul %0, %1, %cst {dimension_numbers = #tpu.dot_dimension_numbers<[1], [0], [0], [1], [0, 0, 1, 1], [], []>} : vector<2x144xf32>, vector<144x144xf32>, vector<2x144xf32> -> vector<2x144xf32>
    %c0_3 = arith.constant 0 : index
    %c0_4 = arith.constant 0 : index
    %3 = vector.load %arg4[%c0_3, %c0_4] : memref<1x144xf32, #tpu.memory_space<vmem>>, vector<1x144xf32>
    %4 = vector.broadcast %3 : vector<1x144xf32> to vector<2x144xf32>
    %5 = arith.addf %2, %4 : vector<2x144xf32>
    %cst_5 = arith.constant 0.000000e+00 : f32
    %6 = vector.broadcast %cst_5 : f32 to vector<2x144xf32>
    %7 = arith.maximumf %5, %6 : vector<2x144xf32>
    %c0_6 = arith.constant 0 : index
    %c0_7 = arith.constant 0 : index
    %8 = vector.load %arg1[%c0_6, %c0_7] : memref<2x400xf32, #tpu.memory_space<vmem>>, vector<2x400xf32>
    %c0_8 = arith.constant 0 : index
    %c0_9 = arith.constant 0 : index
    %9 = vector.load %arg5[%c0_8, %c0_9] : memref<400x400xf32, #tpu.memory_space<vmem>>, vector<400x400xf32>
    %cst_10 = arith.constant dense<0.000000e+00> : vector<2x400xf32>
    %10 = tpu.matmul %8, %9, %cst_10 {dimension_numbers = #tpu.dot_dimension_numbers<[1], [0], [0], [1], [0, 0, 1, 1], [], []>} : vector<2x400xf32>, vector<400x400xf32>, vector<2x400xf32> -> vector<2x400xf32>
    %c0_11 = arith.constant 0 : index
    %c0_12 = arith.constant 0 : index
    %11 = vector.load %arg6[%c0_11, %c0_12] : memref<1x400xf32, #tpu.memory_space<vmem>>, vector<1x400xf32>
    %12 = vector.broadcast %11 : vector<1x400xf32> to vector<2x400xf32>
    %13 = arith.addf %10, %12 : vector<2x400xf32>
    %cst_13 = arith.constant 0.000000e+00 : f32
    %14 = vector.broadcast %cst_13 : f32 to vector<2x400xf32>
    %15 = arith.maximumf %13, %14 : vector<2x400xf32>
    %c0_14 = arith.constant 0 : index
    %c0_15 = arith.constant 0 : index
    %16 = vector.load %arg7[%c0_14, %c0_15] : memref<144x28xf32, #tpu.memory_space<vmem>>, vector<144x28xf32>
    %cst_16 = arith.constant dense<0.000000e+00> : vector<2x28xf32>
    %17 = tpu.matmul %7, %16, %cst_16 {dimension_numbers = #tpu.dot_dimension_numbers<[1], [0], [0], [1], [0, 0, 1, 1], [], []>} : vector<2x144xf32>, vector<144x28xf32>, vector<2x28xf32> -> vector<2x28xf32>
    %c0_17 = arith.constant 0 : index
    %c0_18 = arith.constant 0 : index
    %18 = vector.load %arg8[%c0_17, %c0_18] : memref<400x28xf32, #tpu.memory_space<vmem>>, vector<400x28xf32>
    %cst_19 = arith.constant dense<0.000000e+00> : vector<2x28xf32>
    %19 = tpu.matmul %15, %18, %cst_19 {dimension_numbers = #tpu.dot_dimension_numbers<[1], [0], [0], [1], [0, 0, 1, 1], [], []>} : vector<2x400xf32>, vector<400x28xf32>, vector<2x28xf32> -> vector<2x28xf32>
    %20 = arith.addf %17, %19 : vector<2x28xf32>
    %c0_20 = arith.constant 0 : index
    %c0_21 = arith.constant 0 : index
    %21 = vector.load %arg10[%c0_20, %c0_21] : memref<1x28xf32, #tpu.memory_space<vmem>>, vector<1x28xf32>
    %22 = vector.broadcast %21 : vector<1x28xf32> to vector<2x28xf32>
    %23 = arith.addf %20, %22 : vector<2x28xf32>
    %c0_22 = arith.constant 0 : index
    %c0_23 = arith.constant 0 : index
    %24 = vector.load %arg2[%c0_22, %c0_23] : memref<2x2xf32, #tpu.memory_space<vmem>>, vector<2x1xf32>
    %c0_24 = arith.constant 0 : index
    %c0_25 = arith.constant 0 : index
    %25 = vector.load %arg9[%c0_24, %c0_25] : memref<2x28xf32, #tpu.memory_space<vmem>>, vector<1x28xf32>
    %26 = vector.broadcast %24 : vector<2x1xf32> to vector<2x28xf32>
    %27 = vector.broadcast %25 : vector<1x28xf32> to vector<2x28xf32>
    %28 = arith.mulf %26, %27 : vector<2x28xf32>
    %29 = arith.addf %23, %28 : vector<2x28xf32>
    %c0_26 = arith.constant 0 : index
    %c1 = arith.constant 1 : index
    %30 = vector.load %arg2[%c0_26, %c1] : memref<2x2xf32, #tpu.memory_space<vmem>>, vector<2x1xf32>
    %c1_27 = arith.constant 1 : index
    %c0_28 = arith.constant 0 : index
    %31 = vector.load %arg9[%c1_27, %c0_28] : memref<2x28xf32, #tpu.memory_space<vmem>>, vector<1x28xf32>
    %32 = vector.broadcast %30 : vector<2x1xf32> to vector<2x28xf32>
    %33 = vector.broadcast %31 : vector<1x28xf32> to vector<2x28xf32>
    %34 = arith.mulf %32, %33 : vector<2x28xf32>
    %35 = arith.addf %29, %34 : vector<2x28xf32>
    %c0_29 = arith.constant 0 : index
    %c0_30 = arith.constant 0 : index
    %36 = vector.load %arg11[%c0_29, %c0_30] : memref<2x28xf32, #tpu.memory_space<vmem>>, vector<2x28xf32>
    tpu.vector_store %arg11[%c0_29, %c0_30], %35 {strides = array<i32>} : memref<2x28xf32, #tpu.memory_space<vmem>>, vector<2x28xf32>,
    return
  }
}

</mosaic_0001>

<llo_original>
// kernel: dqn_track_forward.1
$region0: #{dqn_track_forward.1}
  #allocation0 [shape = 'u32[]', space=smem, size = 0x4, offset = 0x4, fixed_abs, tag = 'smem constant byte address 0x4 - core index']
  #allocation1 [shape = 'u32[144,128]{1,0:T(1,128)}', space=vmem, size = 0x12000, scoped, tag = 'internal scratch']
  %s0 = inlined_call_operand.vmem [shape: f32[2,144], index: 0, kind: input, shape index: {}]
  %s1 = inlined_call_operand.vmem [shape: f32[2,400], index: 1, kind: input, shape index: {}]
  %s2 = inlined_call_operand.vmem [shape: f32[2,2], index: 2, kind: input, shape index: {}]
  %s3 = inlined_call_operand.vmem [shape: f32[144,144], index: 3, kind: input, shape index: {}]
  %s4 = inlined_call_operand.vmem [shape: f32[1,144], index: 4, kind: input, shape index: {}]
  %s5 = inlined_call_operand.vmem [shape: f32[400,400], index: 5, kind: input, shape index: {}]
  %s6 = inlined_call_operand.vmem [shape: f32[1,400], index: 6, kind: input, shape index: {}]
  %s7 = inlined_call_operand.vmem [shape: f32[144,28], index: 7, kind: input, shape index: {}]
  %s8 = inlined_call_operand.vmem [shape: f32[400,28], index: 8, kind: input, shape index: {}]
  %s9 = inlined_call_operand.vmem [shape: f32[2,28], index: 9, kind: input, shape index: {}]
  %s10 = inlined_call_operand.vmem [shape: f32[1,28], index: 10, kind: input, shape index: {}]
  %s11 = inlined_call_operand.vmem [shape: f32[2,28], index: 11, kind: output, shape index: {}]
  %s12 = sld [smem:[#allocation0]]
  $region54: #{dqn_track_forward.1} parent=0
    _
  %s14 = ssub.s32 1, %s12
  %s15 = scalar_select 0, %s14, %s12
  // Predicated region
  $region2: #{dqn_track_forward.1} parent=0 // pred_check
    _
  $region3: #{dqn_track_forward.1} parent=0 // pred_check_branch
    %17 = sbr.rel (0) target = $region5
  $region4: #{dqn_track_forward.1} parent=0 // pred_region
    _
  $region5: #{dqn_track_forward.1} parent=0 // pred_fallthru
    _
  // Predicated region
  $region6: #{dqn_track_forward.1} parent=0 // pred_check
    _
  $region7: #{dqn_track_forward.1} parent=0 // pred_check_branch
    %19 = sbr.rel (0) target = $region9
  $region8: #{dqn_track_forward.1} parent=0 // pred_region
    _
  $region9: #{dqn_track_forward.1} parent=0 // pred_fallthru
    _
  // Predicated region
  $region10: #{dqn_track_forward.1} parent=0 // pred_check
    _
  $region11: #{dqn_track_forward.1} parent=0 // pred_check_branch
    %21 = sbr.rel (0) target = $region13
  $region12: #{dqn_track_forward.1} parent=0 // pred_region
    _
  $region13: #{dqn_track_forward.1} parent=0 // pred_fallthru
    _
  // Predicated region
  $region14: #{dqn_track_forward.1} parent=0 // pred_check
    _
  $region15: #{dqn_track_forward.1} parent=0 // pred_check_branch
    %23 = sbr.rel (0) target = $region17
  $region16: #{dqn_track_forward.1} parent=0 // pred_region
    _
  $region17: #{dqn_track_forward.1} parent=0 // pred_fallthru
    _
  // Predicated region
  $region18: #{dqn_track_forward.1} parent=0 // pred_check
    _
  $region19: #{dqn_track_forward.1} parent=0 // pred_check_branch
    %25 = sbr.rel (0) target = $region21
  $region20: #{dqn_track_forward.1} parent=0 // pred_region
    _
  $region21: #{dqn_track_forward.1} parent=0 // pred_fallthru
    _
  // Predicated region
  $region22: #{dqn_track_forward.1} parent=0 // pred_check
    _
  $region23: #{dqn_track_forward.1} parent=0 // pred_check_branch
    %27 = sbr.rel (0) target = $region25
  $region24: #{dqn_track_forward.1} parent=0 // pred_region
    _
  $region25: #{dqn_track_forward.1} parent=0 // pred_fallthru
    _
  // Predicated region
  $region26: #{dqn_track_forward.1} parent=0 // pred_check
    _
  $region27: #{dqn_track_forward.1} parent=0 // pred_check_branch
    %29 = sbr.rel (0) target = $region29
  $region28: #{dqn_track_forward.1} parent=0 // pred_region
    _
  $region29: #{dqn_track_forward.1} parent=0 // pred_fallthru
    _
  // Predicated region
  $region30: #{dqn_track_forward.1} parent=0 // pred_check
    _
  $region31: #{dqn_track_forward.1} parent=0 // pred_check_branch
    %31 = sbr.rel (0) target = $region33
  $region32: #{dqn_track_forward.1} parent=0 // pred_region
    _
  $region33: #{dqn_track_forward.1} parent=0 // pred_fallthru
    _
  // Predicated region
  $region34: #{dqn_track_forward.1} parent=0 // pred_check
    _
  $region35: #{dqn_track_forward.1} parent=0 // pred_check_branch
    %33 = sbr.rel (0) target = $region37
  $region36: #{dqn_track_forward.1} parent=0 // pred_region
    _
  $region37: #{dqn_track_forward.1} parent=0 // pred_fallthru
    _
  // Predicated region
  $region38: #{dqn_track_forward.1} parent=0 // pred_check
    _
  $region39: #{dqn_track_forward.1} parent=0 // pred_check_branch
    %35 = sbr.rel (0) target = $region41
  $region40: #{dqn_track_forward.1} parent=0 // pred_region
    _
  $region41: #{dqn_track_forward.1} parent=0 // pred_fallthru
    _
  // Predicated region
  $region42: #{dqn_track_forward.1} parent=0 // pred_check
    _
  $region43: #{dqn_track_forward.1} parent=0 // pred_check_branch
    %37 = sbr.rel (0) target = $region45
  $region44: #{dqn_track_forward.1} parent=0 // pred_region
    _
  $region45: #{dqn_track_forward.1} parent=0 // pred_fallthru
    _
  %v38 = vld [vmem:[%s0] sm:$0xf]
  %v39 = vld [vmem:[%s3] sm:$0xff]
  %v40 = vld [vmem:[%s3 + $0x8] sm:$0xff]
  %v41 = vld [vmem:[%s3 + $0x10] sm:$0xff]
  %v42 = vld [vmem:[%s3 + $0x18] sm:$0xff]
  %v43 = vld [vmem:[%s3 + $0x20] sm:$0xff]
  %v44 = vld [vmem:[%s3 + $0x28] sm:$0xff]
  %v45 = vld [vmem:[%s3 + $0x30] sm:$0xff]
  %v46 = vld [vmem:[%s3 + $0x38] sm:$0xff]
  %v47 = vld [vmem:[%s3 + $0x40] sm:$0xff]
  %v48 = vld [vmem:[%s3 + $0x48] sm:$0xff]
  %v49 = vld [vmem:[%s3 + $0x50] sm:$0xff]
  %v50 = vld [vmem:[%s3 + $0x58] sm:$0xff]
  %v51 = vld [vmem:[%s3 + $0x60] sm:$0xff]
  %v52 = vld [vmem:[%s3 + $0x68] sm:$0xff]
  %v53 = vld [vmem:[%s3 + $0x70] sm:$0xff]
  %v54 = vld [vmem:[%s3 + $0x78] sm:$0xff]
  %v55 = vld [vmem:[%s3 + $0x80] sm:$0xff]
  %v56 = vld [vmem:[%s3 + $0x88] sm:$0xff]
  %v57 = vld [vmem:[%s3 + $0x90] sm:$0xff]
  %v58 = vld [vmem:[%s3 + $0x98] sm:$0xff]
  %v59 = vld [vmem:[%s3 + $0xa0] sm:$0xff]
  %v60 = vld [vmem:[%s3 + $0xa8] sm:$0xff]
  %v61 = vld [vmem:[%s3 + $0xb0] sm:$0xff]
  %v62 = vld [vmem:[%s3 + $0xb8] sm:$0xff]
  %v63 = vld [vmem:[%s3 + $0xc0] sm:$0xff]
  %v64 = vld [vmem:[%s3 + $0xc8] sm:$0xff]
  %v65 = vld [vmem:[%s3 + $0xd0] sm:$0xff]
  %v66 = vld [vmem:[%s3 + $0xd8] sm:$0xff]
  %v67 = vld [vmem:[%s3 + $0xe0] sm:$0xff]
  %v68 = vld [vmem:[%s3 + $0xe8] sm:$0xff]
  %v69 = vld [vmem:[%s3 + $0xf0] sm:$0xff]
  %v70 = vld [vmem:[%s3 + $0xf8] sm:$0xff]
  %v71 = vld [vmem:[%s3 + $0x100] sm:$0xff]
  %v72 = vld [vmem:[%s3 + $0x108] sm:$0xff]
  %v73 = vld [vmem:[%s3 + $0x110] sm:$0xff]
  %v74 = vld [vmem:[%s3 + $0x118] sm:$0xff]
  %v75 = vld [vmem:[%s4] sm:$0x3]
  %v77 = vlaneseq
  %v78 = vshrl.u32 %v77, 7
  %v79 = vsub.s32 0, %v78
  %v80 = vrot.slane %v75, %v79
  %v81 = vlaneseq
  %v82 = vshrl.u32 %v81, 7
  %v83 = vsub.s32 1, %v82
  %v84 = vrot.slane %v75, %v83
  %v89 = vunpack.c.l.s4 1983009808
  %v90 = vunpack.c.0.s8 %v89
  %v91 = vlaneseq
  %v92 = vshrl.u32 %v91, 7
  %v93 = vsub.s32 %v90, %v92
  %v94 = vrot.slane %v38, %v93
  %v95 = vcombine.high %v94, %v94
  %vm97 = vcmask 130048
  %v98 = vsel %vm97, %v95, 0
  %100 = vmatprep.subr.mxu0 %v40
  %101 = vmatpush1.msra.mxu0 %v39
  %102 = vmatprep.subr.mxu0 %v42
  %103 = vmatpush1.msra.mxu0 %v41
  %104 = vmatprep.subr.mxu0 %v44
  %105 = vmatpush1.msra.mxu0 %v43
  %106 = vmatprep.subr.mxu0 %v46
  %107 = vmatpush1.msra.mxu0 %v45
  %108 = vmatprep.subr.mxu0 %v48
  %109 = vmatpush1.msra.mxu0 %v47
  %110 = vmatprep.subr.mxu0 %v50
  %111 = vmatpush1.msra.mxu0 %v49
  %112 = vmatprep.subr.mxu0 %v52
  %113 = vmatpush1.msra.mxu0 %v51
  %114 = vmatprep.subr.mxu0 %v54
  %115 = vmatpush1.msra.mxu0 %v53
  %116 = vmatprep.subr.mxu0 %v56
  %117 = vmatpush1.msra.mxu0 %v55
  %118 = vmatprep.subr.mxu0 %v58
  %119 = vmatpush1.msra.mxu0 %v57
  %120 = vmatprep.subr.mxu0 %v60
  %121 = vmatpush1.msra.mxu0 %v59
  %122 = vmatprep.subr.mxu0 %v62
  %123 = vmatpush1.msra.mxu0 %v61
  %124 = vmatprep.subr.mxu0 %v64
  %125 = vmatpush1.msra.mxu0 %v63
  %126 = vmatprep.subr.mxu0 %v66
  %127 = vmatpush1.msra.mxu0 %v65
  %128 = vmatprep.subr.mxu0 %v68
  %129 = vmatpush1.msra.mxu0 %v67
  %130 = vmatprep.subr.mxu0 %v70
  %131 = vmatpush1.msra.mxu0 %v69
  %132 = vmatprep.subr.mxu0 %v72
  %133 = vmatpush1.msra.mxu0 %v71
  %134 = vmatprep.subr.mxu0 %v74
  %135 = vmatpush1.msra.mxu0 %v73
  %136 = vmatprep.subr.mxu0 0.0
  %137 = vmatpush1.msra.mxu0 0.0
  %138 = vmatprep.subr.mxu0 0.0
  %139 = vmatpush1.msra.mxu0 0.0
  %140 = vmatprep.subr.mxu0 0.0
  %141 = vmatpush1.msra.mxu0 0.0
  %142 = vmatprep.subr.mxu0 0.0
  %143 = vmatpush1.msra.mxu0 0.0
  %144 = vmatprep.subr.mxu0 0.0
  %145 = vmatpush1.msra.mxu0 0.0
  %146 = vmatprep.subr.mxu0 0.0
  %147 = vmatpush1.msra.mxu0 0.0
  %148 = vmatprep.subr.mxu0 0.0
  %149 = vmatpush1.msra.mxu0 0.0
  %150 = vmatprep.subr.mxu0 0.0
  %151 = vmatpush1.msra.mxu0 0.0
  %152 = vmatprep.subr.mxu0 0.0
  %153 = vmatpush1.msra.mxu0 0.0
  %154 = vmatprep.subr.mxu0 0.0
  %155 = vmatpush1.msra.mxu0 0.0
  %156 = vmatprep.subr.mxu0 0.0
  %157 = vmatpush1.msra.mxu0 0.0
  %158 = vmatprep.subr.mxu0 0.0
  %159 = vmatpush1.msra.mxu0 0.0
  %160 = vmatprep.subr.mxu0 0.0
  %161 = vmatpush1.msra.mxu0 0.0
  %162 = vmatprep.subr.mxu0 0.0
  %163 = vmatpush1.msra.mxu0 0.0
  %164 = vmatprep.mubr.f32.mxu0 %v98
  %165 = vmatmul.mubr.f32.gmra.mrb[0].mxu0 %v94
  %v166 = vpop.f32.mrb[0].mxu0
  %v167 = vadd.f32 %v80, %v166
  %v168 = vpop.f32.mrb[0].mxu0
  %v169 = vadd.f32 %v84, %v168
  %170 = vdwg.mxu0
  %v171 = vmax.f32 %v167, 0.0
  %v172 = vmax.f32 %v169, 0.0
  %v173 = vld [vmem:[%s1] sm:$0xff]
  %v174 = vld [vmem:[%s5] sm:$0xff]
  %v175 = vld [vmem:[%s5 + $0x8] sm:$0xff]
  %v176 = vld [vmem:[%s5 + $0x10] sm:$0xff]
  %v177 = vld [vmem:[%s5 + $0x18] sm:$0xff]
  %v178 = vld [vmem:[%s5 + $0x20] sm:$0xff]
  %v179 = vld [vmem:[%s5 + $0x28] sm:$0xff]
  %v180 = vld [vmem:[%s5 + $0x30] sm:$0xff]
  %v181 = vld [vmem:[%s5 + $0x38] sm:$0xff]
  %v182 = vld [vmem:[%s5 + $0x40] sm:$0xff]
  %v183 = vld [vmem:[%s5 + $0x48] sm:$0xff]
  %v184 = vld [vmem:[%s5 + $0x50] sm:$0xff]
  %v185 = vld [vmem:[%s5 + $0x58] sm:$0xff]
  %v186 = vld [vmem:[%s5 + $0x60] sm:$0xff]
  %v187 = vld [vmem:[%s5 + $0x68] sm:$0xff]
  %v188 = vld [vmem:[%s5 + $0x70] sm:$0xff]
  %v189 = vld [vmem:[%s5 + $0x78] sm:$0xff]
  %v190 = vld [vmem:[%s5 + $0x80] sm:$0xff]
  %v191 = vld [vmem:[%s5 + $0x88] sm:$0xff]
  %v192 = vld [vmem:[%s5 + $0x90] sm:$0xff]
  %v193 = vld [vmem:[%s5 + $0x98] sm:$0xff]
  %v194 = vld [vmem:[%s5 + $0xa0] sm:$0xff]
  %v195 = vld [vmem:[%s5 + $0xa8] sm:$0xff]
  %v196 = vld [vmem:[%s5 + $0xb0] sm:$0xff]
  %v197 = vld [vmem:[%s5 + $0xb8] sm:$0xff]
  %v198 = vld [vmem:[%s5 + $0xc0] sm:$0xff]
  %v199 = vld [vmem:[%s5 + $0xc8] sm:$0xff]
  %v200 = vld [vmem:[%s5 + $0xd0] sm:$0xff]
  %v201 = vld [vmem:[%s5 + $0xd8] sm:$0xff]
  %v202 = vld [vmem:[%s5 + $0xe0] sm:$0xff]
  %v203 = vld [vmem:[%s5 + $0xe8] sm:$0xff]
  %v204 = vld [vmem:[%s5 + $0xf0] sm:$0xff]
  %v205 = vld [vmem:[%s5 + $0xf8] sm:$0xff]
  %v206 = vld [vmem:[%s5 + $0x100] sm:$0xff]
  %v207 = vld [vmem:[%s5 + $0x108] sm:$0xff]
  %v208 = vld [vmem:[%s5 + $0x110] sm:$0xff]
  %v209 = vld [vmem:[%s5 + $0x118] sm:$0xff]
  %v210 = vld [vmem:[%s5 + $0x120] sm:$0xff]
  %v211 = vld [vmem:[%s5 + $0x128] sm:$0xff]
  %v212 = vld [vmem:[%s5 + $0x130] sm:$0xff]
  %v213 = vld [vmem:[%s5 + $0x138] sm:$0xff]
  %v214 = vld [vmem:[%s5 + $0x140] sm:$0xff]
  %v215 = vld [vmem:[%s5 + $0x148] sm:$0xff]
  %v216 = vld [vmem:[%s5 + $0x150] sm:$0xff]
  %v217 = vld [vmem:[%s5 + $0x158] sm:$0xff]
  %v218 = vld [vmem:[%s5 + $0x160] sm:$0xff]
  %v219 = vld [vmem:[%s5 + $0x168] sm:$0xff]
  %v220 = vld [vmem:[%s5 + $0x170] sm:$0xff]
  %v221 = vld [vmem:[%s5 + $0x178] sm:$0xff]
  %v222 = vld [vmem:[%s5 + $0x180] sm:$0xff]
  %v223 = vld [vmem:[%s5 + $0x188] sm:$0xff]
  %v224 = vld [vmem:[%s5 + $0x190] sm:$0xff]
  %v225 = vld [vmem:[%s5 + $0x198] sm:$0xff]
  %v226 = vld [vmem:[%s5 + $0x1a0] sm:$0xff]
  %v227 = vld [vmem:[%s5 + $0x1a8] sm:$0xff]
  %v228 = vld [vmem:[%s5 + $0x1b0] sm:$0xff]
  %v229 = vld [vmem:[%s5 + $0x1b8] sm:$0xff]
  %v230 = vld [vmem:[%s5 + $0x1c0] sm:$0xff]
  %v231 = vld [vmem:[%s5 + $0x1c8] sm:$0xff]
  %v232 = vld [vmem:[%s5 + $0x1d0] sm:$0xff]
  %v233 = vld [vmem:[%s5 + $0x1d8] sm:$0xff]
  %v234 = vld [vmem:[%s5 + $0x1e0] sm:$0xff]
  %v235 = vld [vmem:[%s5 + $0x1e8] sm:$0xff]
  %v236 = vld [vmem:[%s5 + $0x1f0] sm:$0xff]
  %v237 = vld [vmem:[%s5 + $0x1f8] sm:$0xff]
  %v238 = vld [vmem:[%s5 + $0x200] sm:$0xff]
  %v239 = vld [vmem:[%s5 + $0x208] sm:$0xff]
  %v240 = vld [vmem:[%s5 + $0x210] sm:$0xff]
  %v241 = vld [vmem:[%s5 + $0x218] sm:$0xff]
  %v242 = vld [vmem:[%s5 + $0x220] sm:$0xff]
  %v243 = vld [vmem:[%s5 + $0x228] sm:$0xff]
  %v244 = vld [vmem:[%s5 + $0x230] sm:$0xff]
  %v245 = vld [vmem:[%s5 + $0x238] sm:$0xff]
  %v246 = vld [vmem:[%s5 + $0x240] sm:$0xff]
  %v247 = vld [vmem:[%s5 + $0x248] sm:$0xff]
  %v248 = vld [vmem:[%s5 + $0x250] sm:$0xff]
  %v249 = vld [vmem:[%s5 + $0x258] sm:$0xff]
  %v250 = vld [vmem:[%s5 + $0x260] sm:$0xff]
  %v251 = vld [vmem:[%s5 + $0x268] sm:$0xff]
  %v252 = vld [vmem:[%s5 + $0x270] sm:$0xff]
  %v253 = vld [vmem:[%s5 + $0x278] sm:$0xff]
  %v254 = vld [vmem:[%s5 + $0x280] sm:$0xff]
  %v255 = vld [vmem:[%s5 + $0x288] sm:$0xff]
  %v256 = vld [vmem:[%s5 + $0x290] sm:$0xff]
  %v257 = vld [vmem:[%s5 + $0x298] sm:$0xff]
  %v258 = vld [vmem:[%s5 + $0x2a0] sm:$0xff]
  %v259 = vld [vmem:[%s5 + $0x2a8] sm:$0xff]
  %v260 = vld [vmem:[%s5 + $0x2b0] sm:$0xff]
  %v261 = vld [vmem:[%s5 + $0x2b8] sm:$0xff]
  %v262 = vld [vmem:[%s5 + $0x2c0] sm:$0xff]
  %v263 = vld [vmem:[%s5 + $0x2c8] sm:$0xff]
  %v264 = vld [vmem:[%s5 + $0x2d0] sm:$0xff]
  %v265 = vld [vmem:[%s5 + $0x2d8] sm:$0xff]
  %v266 = vld [vmem:[%s5 + $0x2e0] sm:$0xff]
  %v267 = vld [vmem:[%s5 + $0x2e8] sm:$0xff]
  %v268 = vld [vmem:[%s5 + $0x2f0] sm:$0xff]
  %v269 = vld [vmem:[%s5 + $0x2f8] sm:$0xff]
  %v270 = vld [vmem:[%s5 + $0x300] sm:$0xff]
  %v271 = vld [vmem:[%s5 + $0x308] sm:$0xff]
  %v272 = vld [vmem:[%s5 + $0x310] sm:$0xff]
  %v273 = vld [vmem:[%s5 + $0x318] sm:$0xff]
  %v274 = vld [vmem:[%s5 + $0x320] sm:$0xff]
  %v275 = vld [vmem:[%s5 + $0x328] sm:$0xff]
  %v276 = vld [vmem:[%s5 + $0x330] sm:$0xff]
  %v277 = vld [vmem:[%s5 + $0x338] sm:$0xff]
  %v278 = vld [vmem:[%s5 + $0x340] sm:$0xff]
  %v279 = vld [vmem:[%s5 + $0x348] sm:$0xff]
  %v280 = vld [vmem:[%s5 + $0x350] sm:$0xff]
  %v281 = vld [vmem:[%s5 + $0x358] sm:$0xff]
  %v282 = vld [vmem:[%s5 + $0x360] sm:$0xff]
  %v283 = vld [vmem:[%s5 + $0x368] sm:$0xff]
  %v284 = vld [vmem:[%s5 + $0x370] sm:$0xff]
  %v285 = vld [vmem:[%s5 + $0x378] sm:$0xff]
  %v286 = vld [vmem:[%s5 + $0x380] sm:$0xff]
  %v287 = vld [vmem:[%s5 + $0x388] sm:$0xff]
  %v288 = vld [vmem:[%s5 + $0x390] sm:$0xff]
  %v289 = vld [vmem:[%s5 + $0x398] sm:$0xff]
  %v290 = vld [vmem:[%s5 + $0x3a0] sm:$0xff]
  %v291 = vld [vmem:[%s5 + $0x3a8] sm:$0xff]
  %v292 = vld [vmem:[%s5 + $0x3b0] sm:$0xff]
  %v293 = vld [vmem:[%s5 + $0x3b8] sm:$0xff]
  %v294 = vld [vmem:[%s5 + $0x3c0] sm:$0xff]
  %v295 = vld [vmem:[%s5 + $0x3c8] sm:$0xff]
  %v296 = vld [vmem:[%s5 + $0x3d0] sm:$0xff]
  %v297 = vld [vmem:[%s5 + $0x3d8] sm:$0xff]
  %v298 = vld [vmem:[%s5 + $0x3e0] sm:$0xff]
  %v299 = vld [vmem:[%s5 + $0x3e8] sm:$0xff]
  %v300 = vld [vmem:[%s5 + $0x3f0] sm:$0xff]
  %v301 = vld [vmem:[%s5 + $0x3f8] sm:$0xff]
  %v302 = vld [vmem:[%s5 + $0x400] sm:$0xff]
  %v303 = vld [vmem:[%s5 + $0x408] sm:$0xff]
  %v304 = vld [vmem:[%s5 + $0x410] sm:$0xff]
  %v305 = vld [vmem:[%s5 + $0x418] sm:$0xff]
  %v306 = vld [vmem:[%s5 + $0x420] sm:$0xff]
  %v307 = vld [vmem:[%s5 + $0x428] sm:$0xff]
  %v308 = vld [vmem:[%s5 + $0x430] sm:$0xff]
  %v309 = vld [vmem:[%s5 + $0x438] sm:$0xff]
  %v310 = vld [vmem:[%s5 + $0x440] sm:$0xff]
  %v311 = vld [vmem:[%s5 + $0x448] sm:$0xff]
  %v312 = vld [vmem:[%s5 + $0x450] sm:$0xff]
  %v313 = vld [vmem:[%s5 + $0x458] sm:$0xff]
  %v314 = vld [vmem:[%s5 + $0x460] sm:$0xff]
  %v315 = vld [vmem:[%s5 + $0x468] sm:$0xff]
  %v316 = vld [vmem:[%s5 + $0x470] sm:$0xff]
  %v317 = vld [vmem:[%s5 + $0x478] sm:$0xff]
  %v318 = vld [vmem:[%s5 + $0x480] sm:$0xff]
  %v319 = vld [vmem:[%s5 + $0x488] sm:$0xff]
  %v320 = vld [vmem:[%s5 + $0x490] sm:$0xff]
  %v321 = vld [vmem:[%s5 + $0x498] sm:$0xff]
  %v322 = vld [vmem:[%s5 + $0x4a0] sm:$0xff]
  %v323 = vld [vmem:[%s5 + $0x4a8] sm:$0xff]
  %v324 = vld [vmem:[%s5 + $0x4b0] sm:$0xff]
  %v325 = vld [vmem:[%s5 + $0x4b8] sm:$0xff]
  %v326 = vld [vmem:[%s5 + $0x4c0] sm:$0xff]
  %v327 = vld [vmem:[%s5 + $0x4c8] sm:$0xff]
  %v328 = vld [vmem:[%s5 + $0x4d0] sm:$0xff]
  %v329 = vld [vmem:[%s5 + $0x4d8] sm:$0xff]
  %v330 = vld [vmem:[%s5 + $0x4e0] sm:$0xff]
  %v331 = vld [vmem:[%s5 + $0x4e8] sm:$0xff]
  %v332 = vld [vmem:[%s5 + $0x4f0] sm:$0xff]
  %v333 = vld [vmem:[%s5 + $0x4f8] sm:$0xff]
  %v334 = vld [vmem:[%s5 + $0x500] sm:$0xff]
  %v335 = vld [vmem:[%s5 + $0x508] sm:$0xff]
  %v336 = vld [vmem:[%s5 + $0x510] sm:$0xff]
  %v337 = vld [vmem:[%s5 + $0x518] sm:$0xff]
  %v338 = vld [vmem:[%s5 + $0x520] sm:$0xff]
  %v339 = vld [vmem:[%s5 + $0x528] sm:$0xff]
  %v340 = vld [vmem:[%s5 + $0x530] sm:$0xff]
  %v341 = vld [vmem:[%s5 + $0x538] sm:$0xff]
  %v342 = vld [vmem:[%s5 + $0x540] sm:$0xff]
  %v343 = vld [vmem:[%s5 + $0x548] sm:$0xff]
  %v344 = vld [vmem:[%s5 + $0x550] sm:$0xff]
  %v345 = vld [vmem:[%s5 + $0x558] sm:$0xff]
  %v346 = vld [vmem:[%s5 + $0x560] sm:$0xff]
  %v347 = vld [vmem:[%s5 + $0x568] sm:$0xff]
  %v348 = vld [vmem:[%s5 + $0x570] sm:$0xff]
  %v349 = vld [vmem:[%s5 + $0x578] sm:$0xff]
  %v350 = vld [vmem:[%s5 + $0x580] sm:$0xff]
  %v351 = vld [vmem:[%s5 + $0x588] sm:$0xff]
  %v352 = vld [vmem:[%s5 + $0x590] sm:$0xff]
  %v353 = vld [vmem:[%s5 + $0x598] sm:$0xff]
  %v354 = vld [vmem:[%s5 + $0x5a0] sm:$0xff]
  %v355 = vld [vmem:[%s5 + $0x5a8] sm:$0xff]
  %v356 = vld [vmem:[%s5 + $0x5b0] sm:$0xff]
  %v357 = vld [vmem:[%s5 + $0x5b8] sm:$0xff]
  %v358 = vld [vmem:[%s5 + $0x5c0] sm:$0xff]
  %v359 = vld [vmem:[%s5 + $0x5c8] sm:$0xff]
  %v360 = vld [vmem:[%s5 + $0x5d0] sm:$0xff]
  %v361 = vld [vmem:[%s5 + $0x5d8] sm:$0xff]
  %v362 = vld [vmem:[%s5 + $0x5e0] sm:$0xff]
  %v363 = vld [vmem:[%s5 + $0x5e8] sm:$0xff]
  %v364 = vld [vmem:[%s5 + $0x5f0] sm:$0xff]
  %v365 = vld [vmem:[%s5 + $0x5f8] sm:$0xff]
  %v366 = vld [vmem:[%s5 + $0x600] sm:$0xff]
  %v367 = vld [vmem:[%s5 + $0x608] sm:$0xff]
  %v368 = vld [vmem:[%s5 + $0x610] sm:$0xff]
  %v369 = vld [vmem:[%s5 + $0x618] sm:$0xff]
  %v370 = vld [vmem:[%s5 + $0x620] sm:$0xff]
  %v371 = vld [vmem:[%s5 + $0x628] sm:$0xff]
  %v372 = vld [vmem:[%s5 + $0x630] sm:$0xff]
  %v373 = vld [vmem:[%s5 + $0x638] sm:$0xff]
  %v374 = vld [vmem:[%s6] sm:$0xf]
  %v376 = vlaneseq
  %v377 = vshrl.u32 %v376, 7
  %v378 = vsub.s32 0, %v377
  %v379 = vrot.slane %v374, %v378
  %v380 = vlaneseq
  %v381 = vshrl.u32 %v380, 7
  %v382 = vsub.s32 1, %v381
  %v383 = vrot.slane %v374, %v382
  %v384 = vlaneseq
  %v385 = vshrl.u32 %v384, 7
  %v386 = vsub.s32 2, %v385
  %v387 = vrot.slane %v374, %v386
  %v388 = vlaneseq
  %v389 = vshrl.u32 %v388, 7
  %v390 = vsub.s32 3, %v389
  %v391 = vrot.slane %v374, %v390
  %v397 = vcombine.high %v173, %v173
  %v399 = vunpack.c.l.s4 1983009808
  %v400 = vunpack.c.0.s8 %v399
  %v401 = vlaneseq
  %v402 = vshrl.u32 %v401, 7
  %v403 = vsub.s32 %v400, %v402
  %v404 = vrot.slane %v173, %v403
  %v406 = vunpack.c.l.s4 1983009808
  %v407 = vunpack.c.0.s8 %v406
  %v408 = vlaneseq
  %v409 = vshrl.u32 %v408, 7
  %v410 = vsub.s32 %v407, %v409
  %v411 = vrot.slane %v397, %v410
  %v412 = vcombine.high %v404, %v404
  %v413 = vcombine.high %v411, %v411
  %v417 = vsel %vm97, %v413, 0
  %419 = vmatprep.subr.mxu0 %v175
  %420 = vmatpush1.msra.mxu0 %v174
  %421 = vmatprep.subr.mxu0 %v179
  %422 = vmatpush1.msra.mxu0 %v178
  %423 = vmatprep.subr.mxu0 %v183
  %424 = vmatpush1.msra.mxu0 %v182
  %425 = vmatprep.subr.mxu0 %v187
  %426 = vmatpush1.msra.mxu0 %v186
  %427 = vmatprep.subr.mxu0 %v191
  %428 = vmatpush1.msra.mxu0 %v190
  %429 = vmatprep.subr.mxu0 %v195
  %430 = vmatpush1.msra.mxu0 %v194
  %431 = vmatprep.subr.mxu0 %v199
  %432 = vmatpush1.msra.mxu0 %v198
  %433 = vmatprep.subr.mxu0 %v203
  %434 = vmatpush1.msra.mxu0 %v202
  %435 = vmatprep.subr.mxu0 %v207
  %436 = vmatpush1.msra.mxu0 %v206
  %437 = vmatprep.subr.mxu0 %v211
  %438 = vmatpush1.msra.mxu0 %v210
  %439 = vmatprep.subr.mxu0 %v215
  %440 = vmatpush1.msra.mxu0 %v214
  %441 = vmatprep.subr.mxu0 %v219
  %442 = vmatpush1.msra.mxu0 %v218
  %443 = vmatprep.subr.mxu0 %v223
  %444 = vmatpush1.msra.mxu0 %v222
  %445 = vmatprep.subr.mxu0 %v227
  %446 = vmatpush1.msra.mxu0 %v226
  %447 = vmatprep.subr.mxu0 %v231
  %448 = vmatpush1.msra.mxu0 %v230
  %449 = vmatprep.subr.mxu0 %v235
  %450 = vmatpush1.msra.mxu0 %v234
  %451 = vmatprep.subr.mxu0 %v239
  %452 = vmatpush1.msra.mxu0 %v238
  %453 = vmatprep.subr.mxu0 %v243
  %454 = vmatpush1.msra.mxu0 %v242
  %455 = vmatprep.subr.mxu0 %v247
  %456 = vmatpush1.msra.mxu0 %v246
  %457 = vmatprep.subr.mxu0 %v251
  %458 = vmatpush1.msra.mxu0 %v250
  %459 = vmatprep.subr.mxu0 %v255
  %460 = vmatpush1.msra.mxu0 %v254
  %461 = vmatprep.subr.mxu0 %v259
  %462 = vmatpush1.msra.mxu0 %v258
  %463 = vmatprep.subr.mxu0 %v263
  %464 = vmatpush1.msra.mxu0 %v262
  %465 = vmatprep.subr.mxu0 %v267
  %466 = vmatpush1.msra.mxu0 %v266
  %467 = vmatprep.subr.mxu0 %v271
  %468 = vmatpush1.msra.mxu0 %v270
  %469 = vmatprep.subr.mxu0 %v275
  %470 = vmatpush1.msra.mxu0 %v274
  %471 = vmatprep.subr.mxu0 %v279
  %472 = vmatpush1.msra.mxu0 %v278
  %473 = vmatprep.subr.mxu0 %v283
  %474 = vmatpush1.msra.mxu0 %v282
  %475 = vmatprep.subr.mxu0 %v287
  %476 = vmatpush1.msra.mxu0 %v286
  %477 = vmatprep.subr.mxu0 %v291
  %478 = vmatpush1.msra.mxu0 %v290
  %479 = vmatprep.subr.mxu0 %v295
  %480 = vmatpush1.msra.mxu0 %v294
  %481 = vmatprep.subr.mxu0 %v299
  %482 = vmatpush1.msra.mxu0 %v298
  %483 = vmatprep.mubr.f32.mxu0 %v412
  %484 = vmatmul.mubr.f32.gmra.mrb[0].mxu0 %v404
  %v485 = vpop.f32.mrb[0].mxu0
  %v486 = vadd.f32 %v379, %v485
  %v487 = vpop.f32.mrb[0].mxu0
  %v488 = vadd.f32 %v383, %v487
  %489 = vdwg.mxu0
  %490 = vmatprep.subr.mxu0 %v303
  %491 = vmatpush1.msra.mxu0 %v302
  %492 = vmatprep.subr.mxu0 %v307
  %493 = vmatpush1.msra.mxu0 %v306
  %494 = vmatprep.subr.mxu0 %v311
  %495 = vmatpush1.msra.mxu0 %v310
  %496 = vmatprep.subr.mxu0 %v315
  %497 = vmatpush1.msra.mxu0 %v314
  %498 = vmatprep.subr.mxu0 %v319
  %499 = vmatpush1.msra.mxu0 %v318
  %500 = vmatprep.subr.mxu0 %v323
  %501 = vmatpush1.msra.mxu0 %v322
  %502 = vmatprep.subr.mxu0 %v327
  %503 = vmatpush1.msra.mxu0 %v326
  %504 = vmatprep.subr.mxu0 %v331
  %505 = vmatpush1.msra.mxu0 %v330
  %506 = vmatprep.subr.mxu0 %v335
  %507 = vmatpush1.msra.mxu0 %v334
  %508 = vmatprep.subr.mxu0 %v339
  %509 = vmatpush1.msra.mxu0 %v338
  %510 = vmatprep.subr.mxu0 %v343
  %511 = vmatpush1.msra.mxu0 %v342
  %512 = vmatprep.subr.mxu0 %v347
  %513 = vmatpush1.msra.mxu0 %v346
  %514 = vmatprep.subr.mxu0 %v351
  %515 = vmatpush1.msra.mxu0 %v350
  %516 = vmatprep.subr.mxu0 %v355
  %517 = vmatpush1.msra.mxu0 %v354
  %518 = vmatprep.subr.mxu0 %v359
  %519 = vmatpush1.msra.mxu0 %v358
  %520 = vmatprep.subr.mxu0 %v363
  %521 = vmatpush1.msra.mxu0 %v362
  %522 = vmatprep.subr.mxu0 %v367
  %523 = vmatpush1.msra.mxu0 %v366
  %524 = vmatprep.subr.mxu0 %v371
  %525 = vmatpush1.msra.mxu0 %v370
  %526 = vmatprep.subr.mxu0 0.0
  %527 = vmatpush1.msra.mxu0 0.0
  %528 = vmatprep.subr.mxu0 0.0
  %529 = vmatpush1.msra.mxu0 0.0
  %530 = vmatprep.subr.mxu0 0.0
  %531 = vmatpush1.msra.mxu0 0.0
  %532 = vmatprep.subr.mxu0 0.0
  %533 = vmatpush1.msra.mxu0 0.0
  %534 = vmatprep.subr.mxu0 0.0
  %535 = vmatpush1.msra.mxu0 0.0
  %536 = vmatprep.subr.mxu0 0.0
  %537 = vmatpush1.msra.mxu0 0.0
  %538 = vmatprep.subr.mxu0 0.0
  %539 = vmatpush1.msra.mxu0 0.0
  %540 = vmatprep.subr.mxu0 0.0
  %541 = vmatpush1.msra.mxu0 0.0
  %542 = vmatprep.subr.mxu0 0.0
  %543 = vmatpush1.msra.mxu0 0.0
  %544 = vmatprep.subr.mxu0 0.0
  %545 = vmatpush1.msra.mxu0 0.0
  %546 = vmatprep.subr.mxu0 0.0
  %547 = vmatpush1.msra.mxu0 0.0
  %548 = vmatprep.subr.mxu0 0.0
  %549 = vmatpush1.msra.mxu0 0.0
  %550 = vmatprep.subr.mxu0 0.0
  %551 = vmatpush1.msra.mxu0 0.0
  %552 = vmatprep.subr.mxu0 0.0
  %553 = vmatpush1.msra.mxu0 0.0
  %554 = vmatprep.mubr.f32.mxu0 %v417
  %555 = vmatmul.mubr.f32.gmra.mrb[0].mxu0 %v411
  %v556 = vpop.f32.mrb[0].mxu0
  %v557 = vadd.f32 %v486, %v556
  %v558 = vpop.f32.mrb[0].mxu0
  %v559 = vadd.f32 %v488, %v558
  %560 = vdwg.mxu0
  %561 = vmatprep.subr.mxu0 %v177
  %562 = vmatpush1.msra.mxu0 %v176
  %563 = vmatprep.subr.mxu0 %v181
  %564 = vmatpush1.msra.mxu0 %v180
  %565 = vmatprep.subr.mxu0 %v185
  %566 = vmatpush1.msra.mxu0 %v184
  %567 = vmatprep.subr.mxu0 %v189
  %568 = vmatpush1.msra.mxu0 %v188
  %569 = vmatprep.subr.mxu0 %v193
  %570 = vmatpush1.msra.mxu0 %v192
  %571 = vmatprep.subr.mxu0 %v197
  %572 = vmatpush1.msra.mxu0 %v196
  %573 = vmatprep.subr.mxu0 %v201
  %574 = vmatpush1.msra.mxu0 %v200
  %575 = vmatprep.subr.mxu0 %v205
  %576 = vmatpush1.msra.mxu0 %v204
  %577 = vmatprep.subr.mxu0 %v209
  %578 = vmatpush1.msra.mxu0 %v208
  %579 = vmatprep.subr.mxu0 %v213
  %580 = vmatpush1.msra.mxu0 %v212
  %581 = vmatprep.subr.mxu0 %v217
  %582 = vmatpush1.msra.mxu0 %v216
  %583 = vmatprep.subr.mxu0 %v221
  %584 = vmatpush1.msra.mxu0 %v220
  %585 = vmatprep.subr.mxu0 %v225
  %586 = vmatpush1.msra.mxu0 %v224
  %587 = vmatprep.subr.mxu0 %v229
  %588 = vmatpush1.msra.mxu0 %v228
  %589 = vmatprep.subr.mxu0 %v233
  %590 = vmatpush1.msra.mxu0 %v232
  %591 = vmatprep.subr.mxu0 %v237
  %592 = vmatpush1.msra.mxu0 %v236
  %593 = vmatprep.subr.mxu0 %v241
  %594 = vmatpush1.msra.mxu0 %v240
  %595 = vmatprep.subr.mxu0 %v245
  %596 = vmatpush1.msra.mxu0 %v244
  %597 = vmatprep.subr.mxu0 %v249
  %598 = vmatpush1.msra.mxu0 %v248
  %599 = vmatprep.subr.mxu0 %v253
  %600 = vmatpush1.msra.mxu0 %v252
  %601 = vmatprep.subr.mxu0 %v257
  %602 = vmatpush1.msra.mxu0 %v256
  %603 = vmatprep.subr.mxu0 %v261
  %604 = vmatpush1.msra.mxu0 %v260
  %605 = vmatprep.subr.mxu0 %v265
  %606 = vmatpush1.msra.mxu0 %v264
  %607 = vmatprep.subr.mxu0 %v269
  %608 = vmatpush1.msra.mxu0 %v268
  %609 = vmatprep.subr.mxu0 %v273
  %610 = vmatpush1.msra.mxu0 %v272
  %611 = vmatprep.subr.mxu0 %v277
  %612 = vmatpush1.msra.mxu0 %v276
  %613 = vmatprep.subr.mxu0 %v281
  %614 = vmatpush1.msra.mxu0 %v280
  %615 = vmatprep.subr.mxu0 %v285
  %616 = vmatpush1.msra.mxu0 %v284
  %617 = vmatprep.subr.mxu0 %v289
  %618 = vmatpush1.msra.mxu0 %v288
  %619 = vmatprep.subr.mxu0 %v293
  %620 = vmatpush1.msra.mxu0 %v292
  %621 = vmatprep.subr.mxu0 %v297
  %622 = vmatpush1.msra.mxu0 %v296
  %623 = vmatprep.subr.mxu0 %v301
  %624 = vmatpush1.msra.mxu0 %v300
  %625 = vmatprep.mubr.f32.mxu0 %v412
  %626 = vmatmul.mubr.f32.gmra.mrb[0].mxu0 %v404
  %v627 = vpop.f32.mrb[0].mxu0
  %v628 = vadd.f32 %v387, %v627
  %v629 = vpop.f32.mrb[0].mxu0
  %v630 = vadd.f32 %v391, %v629
  %631 = vdwg.mxu0
  %632 = vmatprep.subr.mxu0 %v305
  %633 = vmatpush1.msra.mxu0 %v304
  %634 = vmatprep.subr.mxu0 %v309
  %635 = vmatpush1.msra.mxu0 %v308
  %636 = vmatprep.subr.mxu0 %v313
  %637 = vmatpush1.msra.mxu0 %v312
  %638 = vmatprep.subr.mxu0 %v317
  %639 = vmatpush1.msra.mxu0 %v316
  %640 = vmatprep.subr.mxu0 %v321
  %641 = vmatpush1.msra.mxu0 %v320
  %642 = vmatprep.subr.mxu0 %v325
  %643 = vmatpush1.msra.mxu0 %v324
  %644 = vmatprep.subr.mxu0 %v329
  %645 = vmatpush1.msra.mxu0 %v328
  %646 = vmatprep.subr.mxu0 %v333
  %647 = vmatpush1.msra.mxu0 %v332
  %648 = vmatprep.subr.mxu0 %v337
  %649 = vmatpush1.msra.mxu0 %v336
  %650 = vmatprep.subr.mxu0 %v341
  %651 = vmatpush1.msra.mxu0 %v340
  %652 = vmatprep.subr.mxu0 %v345
  %653 = vmatpush1.msra.mxu0 %v344
  %654 = vmatprep.subr.mxu0 %v349
  %655 = vmatpush1.msra.mxu0 %v348
  %656 = vmatprep.subr.mxu0 %v353
  %657 = vmatpush1.msra.mxu0 %v352
  %658 = vmatprep.subr.mxu0 %v357
  %659 = vmatpush1.msra.mxu0 %v356
  %660 = vmatprep.subr.mxu0 %v361
  %661 = vmatpush1.msra.mxu0 %v360
  %662 = vmatprep.subr.mxu0 %v365
  %663 = vmatpush1.msra.mxu0 %v364
  %664 = vmatprep.subr.mxu0 %v369
  %665 = vmatpush1.msra.mxu0 %v368
  %666 = vmatprep.subr.mxu0 %v373
  %667 = vmatpush1.msra.mxu0 %v372
  %668 = vmatprep.subr.mxu0 0.0
  %669 = vmatpush1.msra.mxu0 0.0
  %670 = vmatprep.subr.mxu0 0.0
  %671 = vmatpush1.msra.mxu0 0.0
  %672 = vmatprep.subr.mxu0 0.0
  %673 = vmatpush1.msra.mxu0 0.0
  %674 = vmatprep.subr.mxu0 0.0
  %675 = vmatpush1.msra.mxu0 0.0
  %676 = vmatprep.subr.mxu0 0.0
  %677 = vmatpush1.msra.mxu0 0.0
  %678 = vmatprep.subr.mxu0 0.0
  %679 = vmatpush1.msra.mxu0 0.0
  %680 = vmatprep.subr.mxu0 0.0
  %681 = vmatpush1.msra.mxu0 0.0
  %682 = vmatprep.subr.mxu0 0.0
  %683 = vmatpush1.msra.mxu0 0.0
  %684 = vmatprep.subr.mxu0 0.0
  %685 = vmatpush1.msra.mxu0 0.0
  %686 = vmatprep.subr.mxu0 0.0
  %687 = vmatpush1.msra.mxu0 0.0
  %688 = vmatprep.subr.mxu0 0.0
  %689 = vmatpush1.msra.mxu0 0.0
  %690 = vmatprep.subr.mxu0 0.0
  %691 = vmatpush1.msra.mxu0 0.0
  %692 = vmatprep.subr.mxu0 0.0
  %693 = vmatpush1.msra.mxu0 0.0
  %694 = vmatprep.subr.mxu0 0.0
  %695 = vmatpush1.msra.mxu0 0.0
  %696 = vmatprep.mubr.f32.mxu0 %v417
  %697 = vmatmul.mubr.f32.gmra.mrb[0].mxu0 %v411
  %v698 = vpop.f32.mrb[0].mxu0
  %v699 = vadd.f32 %v628, %v698
  %v700 = vpop.f32.mrb[0].mxu0
  %v701 = vadd.f32 %v630, %v700
  %702 = vdwg.mxu0
  %v703 = vmax.f32 %v557, 0.0
  %v704 = vmax.f32 %v559, 0.0
  %v705 = vmax.f32 %v699, 0.0
  %v706 = vmax.f32 %v701, 0.0
  %v707 = vld [vmem:[%s7] sm:$0xff]
  %v708 = vld [vmem:[%s7 + $0x8] sm:$0xff]
  %v709 = vld [vmem:[%s7 + $0x10] sm:$0xff]
  %v710 = vld [vmem:[%s7 + $0x18] sm:$0xff]
  %v711 = vld [vmem:[%s7 + $0x20] sm:$0xff]
  %v712 = vld [vmem:[%s7 + $0x28] sm:$0xff]
  %v713 = vld [vmem:[%s7 + $0x30] sm:$0xff]
  %v714 = vld [vmem:[%s7 + $0x38] sm:$0xff]
  %v715 = vld [vmem:[%s7 + $0x40] sm:$0xff]
  %v716 = vld [vmem:[%s7 + $0x48] sm:$0xff]
  %v717 = vld [vmem:[%s7 + $0x50] sm:$0xff]
  %v718 = vld [vmem:[%s7 + $0x58] sm:$0xff]
  %v719 = vld [vmem:[%s7 + $0x60] sm:$0xff]
  %v720 = vld [vmem:[%s7 + $0x68] sm:$0xff]
  %v721 = vld [vmem:[%s7 + $0x70] sm:$0xff]
  %v722 = vld [vmem:[%s7 + $0x78] sm:$0xff]
  %v723 = vld [vmem:[%s7 + $0x80] sm:$0xff]
  %v724 = vld [vmem:[%s7 + $0x88] sm:$0xff]
  %v725 = vld [vmem:[%s8] sm:$0xff]
  %v726 = vld [vmem:[%s8 + $0x8] sm:$0xff]
  %v727 = vld [vmem:[%s8 + $0x10] sm:$0xff]
  %v728 = vld [vmem:[%s8 + $0x18] sm:$0xff]
  %v729 = vld [vmem:[%s8 + $0x20] sm:$0xff]
  %v730 = vld [vmem:[%s8 + $0x28] sm:$0xff]
  %v731 = vld [vmem:[%s8 + $0x30] sm:$0xff]
  %v732 = vld [vmem:[%s8 + $0x38] sm:$0xff]
  %v733 = vld [vmem:[%s8 + $0x40] sm:$0xff]
  %v734 = vld [vmem:[%s8 + $0x48] sm:$0xff]
  %v735 = vld [vmem:[%s8 + $0x50] sm:$0xff]
  %v736 = vld [vmem:[%s8 + $0x58] sm:$0xff]
  %v737 = vld [vmem:[%s8 + $0x60] sm:$0xff]
  %v738 = vld [vmem:[%s8 + $0x68] sm:$0xff]
  %v739 = vld [vmem:[%s8 + $0x70] sm:$0xff]
  %v740 = vld [vmem:[%s8 + $0x78] sm:$0xff]
  %v741 = vld [vmem:[%s8 + $0x80] sm:$0xff]
  %v742 = vld [vmem:[%s8 + $0x88] sm:$0xff]
  %v743 = vld [vmem:[%s8 + $0x90] sm:$0xff]
  %v744 = vld [vmem:[%s8 + $0x98] sm:$0xff]
  %v745 = vld [vmem:[%s8 + $0xa0] sm:$0xff]
  %v746 = vld [vmem:[%s8 + $0xa8] sm:$0xff]
  %v747 = vld [vmem:[%s8 + $0xb0] sm:$0xff]
  %v748 = vld [vmem:[%s8 + $0xb8] sm:$0xff]
  %v749 = vld [vmem:[%s8 + $0xc0] sm:$0xff]
  %v750 = vld [vmem:[%s8 + $0xc8] sm:$0xff]
  %v751 = vld [vmem:[%s8 + $0xd0] sm:$0xff]
  %v752 = vld [vmem:[%s8 + $0xd8] sm:$0xff]
  %v753 = vld [vmem:[%s8 + $0xe0] sm:$0xff]
  %v754 = vld [vmem:[%s8 + $0xe8] sm:$0xff]
  %v755 = vld [vmem:[%s8 + $0xf0] sm:$0xff]
  %v756 = vld [vmem:[%s8 + $0xf8] sm:$0xff]
  %v757 = vld [vmem:[%s8 + $0x100] sm:$0xff]
  %v758 = vld [vmem:[%s8 + $0x108] sm:$0xff]
  %v759 = vld [vmem:[%s8 + $0x110] sm:$0xff]
  %v760 = vld [vmem:[%s8 + $0x118] sm:$0xff]
  %v761 = vld [vmem:[%s8 + $0x120] sm:$0xff]
  %v762 = vld [vmem:[%s8 + $0x128] sm:$0xff]
  %v763 = vld [vmem:[%s8 + $0x130] sm:$0xff]
  %v764 = vld [vmem:[%s8 + $0x138] sm:$0xff]
  %v765 = vld [vmem:[%s8 + $0x140] sm:$0xff]
  %v766 = vld [vmem:[%s8 + $0x148] sm:$0xff]
  %v767 = vld [vmem:[%s8 + $0x150] sm:$0xff]
  %v768 = vld [vmem:[%s8 + $0x158] sm:$0xff]
  %v769 = vld [vmem:[%s8 + $0x160] sm:$0xff]
  %v770 = vld [vmem:[%s8 + $0x168] sm:$0xff]
  %v771 = vld [vmem:[%s8 + $0x170] sm:$0xff]
  %v772 = vld [vmem:[%s8 + $0x178] sm:$0xff]
  %v773 = vld [vmem:[%s8 + $0x180] sm:$0xff]
  %v774 = vld [vmem:[%s8 + $0x188] sm:$0xff]
  %v776 = vsel %vm97, %v706, 0
  %778 = vmatprep.subr.mxu0 0.0
  %779 = vmatpush1.msra.mxu0 %v725
  %780 = vmatprep.subr.mxu0 0.0
  %781 = vmatpush1.msra.mxu0 %v726
  %782 = vmatprep.subr.mxu0 0.0
  %783 = vmatpush1.msra.mxu0 %v727
  %784 = vmatprep.subr.mxu0 0.0
  %785 = vmatpush1.msra.mxu0 %v728
  %786 = vmatprep.subr.mxu0 0.0
  %787 = vmatpush1.msra.mxu0 %v729
  %788 = vmatprep.subr.mxu0 0.0
  %789 = vmatpush1.msra.mxu0 %v730
  %790 = vmatprep.subr.mxu0 0.0
  %791 = vmatpush1.msra.mxu0 %v731
  %792 = vmatprep.subr.mxu0 0.0
  %793 = vmatpush1.msra.mxu0 %v732
  %794 = vmatprep.subr.mxu0 0.0
  %795 = vmatpush1.msra.mxu0 %v733
  %796 = vmatprep.subr.mxu0 0.0
  %797 = vmatpush1.msra.mxu0 %v734
  %798 = vmatprep.subr.mxu0 0.0
  %799 = vmatpush1.msra.mxu0 %v735
  %800 = vmatprep.subr.mxu0 0.0
  %801 = vmatpush1.msra.mxu0 %v736
  %802 = vmatprep.subr.mxu0 0.0
  %803 = vmatpush1.msra.mxu0 %v737
  %804 = vmatprep.subr.mxu0 0.0
  %805 = vmatpush1.msra.mxu0 %v738
  %806 = vmatprep.subr.mxu0 0.0
  %807 = vmatpush1.msra.mxu0 %v739
  %808 = vmatprep.subr.mxu0 0.0
  %809 = vmatpush1.msra.mxu0 %v740
  %810 = vmatprep.subr.mxu0 0.0
  %811 = vmatpush1.msra.mxu0 %v741
  %812 = vmatprep.subr.mxu0 0.0
  %813 = vmatpush1.msra.mxu0 %v742
  %814 = vmatprep.subr.mxu0 0.0
  %815 = vmatpush1.msra.mxu0 %v743
  %816 = vmatprep.subr.mxu0 0.0
  %817 = vmatpush1.msra.mxu0 %v744
  %818 = vmatprep.subr.mxu0 0.0
  %819 = vmatpush1.msra.mxu0 %v745
  %820 = vmatprep.subr.mxu0 0.0
  %821 = vmatpush1.msra.mxu0 %v746
  %822 = vmatprep.subr.mxu0 0.0
  %823 = vmatpush1.msra.mxu0 %v747
  %824 = vmatprep.subr.mxu0 0.0
  %825 = vmatpush1.msra.mxu0 %v748
  %826 = vmatprep.subr.mxu0 0.0
  %827 = vmatpush1.msra.mxu0 %v749
  %828 = vmatprep.subr.mxu0 0.0
  %829 = vmatpush1.msra.mxu0 %v750
  %830 = vmatprep.subr.mxu0 0.0
  %831 = vmatpush1.msra.mxu0 %v751
  %832 = vmatprep.subr.mxu0 0.0
  %833 = vmatpush1.msra.mxu0 %v752
  %834 = vmatprep.subr.mxu0 0.0
  %835 = vmatpush1.msra.mxu0 %v753
  %836 = vmatprep.subr.mxu0 0.0
  %837 = vmatpush1.msra.mxu0 %v754
  %838 = vmatprep.subr.mxu0 0.0
  %839 = vmatpush1.msra.mxu0 %v755
  %840 = vmatprep.subr.mxu0 0.0
  %841 = vmatpush1.msra.mxu0 %v756
  %842 = vmatprep.mubr.f32.mxu0 %v704
  %843 = vmatmul.mubr.f32.gmra.mrb[0].mxu0 %v703
  %v844 = vpop.f32.mrb[0].mxu0
  %v845 = vadd.f32 0.0, %v844
  %v846 = vpop.f32.mrb[0].mxu0
  %847 = vdwg.mxu0
  %848 = vmatprep.subr.mxu0 0.0
  %849 = vmatpush1.msra.mxu0 %v757
  %850 = vmatprep.subr.mxu0 0.0
  %851 = vmatpush1.msra.mxu0 %v758
  %852 = vmatprep.subr.mxu0 0.0
  %853 = vmatpush1.msra.mxu0 %v759
  %854 = vmatprep.subr.mxu0 0.0
  %855 = vmatpush1.msra.mxu0 %v760
  %856 = vmatprep.subr.mxu0 0.0
  %857 = vmatpush1.msra.mxu0 %v761
  %858 = vmatprep.subr.mxu0 0.0
  %859 = vmatpush1.msra.mxu0 %v762
  %860 = vmatprep.subr.mxu0 0.0
  %861 = vmatpush1.msra.mxu0 %v763
  %862 = vmatprep.subr.mxu0 0.0
  %863 = vmatpush1.msra.mxu0 %v764
  %864 = vmatprep.subr.mxu0 0.0
  %865 = vmatpush1.msra.mxu0 %v765
  %866 = vmatprep.subr.mxu0 0.0
  %867 = vmatpush1.msra.mxu0 %v766
  %868 = vmatprep.subr.mxu0 0.0
  %869 = vmatpush1.msra.mxu0 %v767
  %870 = vmatprep.subr.mxu0 0.0
  %871 = vmatpush1.msra.mxu0 %v768
  %872 = vmatprep.subr.mxu0 0.0
  %873 = vmatpush1.msra.mxu0 %v769
  %874 = vmatprep.subr.mxu0 0.0
  %875 = vmatpush1.msra.mxu0 %v770
  %876 = vmatprep.subr.mxu0 0.0
  %877 = vmatpush1.msra.mxu0 %v771
  %878 = vmatprep.subr.mxu0 0.0
  %879 = vmatpush1.msra.mxu0 %v772
  %880 = vmatprep.subr.mxu0 0.0
  %881 = vmatpush1.msra.mxu0 %v773
  %882 = vmatprep.subr.mxu0 0.0
  %883 = vmatpush1.msra.mxu0 %v774
  %884 = vmatprep.subr.mxu0 0.0
  %885 = vmatpush1.msra.mxu0 0.0
  %886 = vmatprep.subr.mxu0 0.0
  %887 = vmatpush1.msra.mxu0 0.0
  %888 = vmatprep.subr.mxu0 0.0
  %889 = vmatpush1.msra.mxu0 0.0
  %890 = vmatprep.subr.mxu0 0.0
  %891 = vmatpush1.msra.mxu0 0.0
  %892 = vmatprep.subr.mxu0 0.0
  %893 = vmatpush1.msra.mxu0 0.0
  %894 = vmatprep.subr.mxu0 0.0
  %895 = vmatpush1.msra.mxu0 0.0
  %896 = vmatprep.subr.mxu0 0.0
  %897 = vmatpush1.msra.mxu0 0.0
  %898 = vmatprep.subr.mxu0 0.0
  %899 = vmatpush1.msra.mxu0 0.0
  %900 = vmatprep.subr.mxu0 0.0
  %901 = vmatpush1.msra.mxu0 0.0
  %902 = vmatprep.subr.mxu0 0.0
  %903 = vmatpush1.msra.mxu0 0.0
  %904 = vmatprep.subr.mxu0 0.0
  %905 = vmatpush1.msra.mxu0 0.0
  %906 = vmatprep.subr.mxu0 0.0
  %907 = vmatpush1.msra.mxu0 0.0
  %908 = vmatprep.subr.mxu0 0.0
  %909 = vmatpush1.msra.mxu0 0.0
  %910 = vmatprep.subr.mxu0 0.0
  %911 = vmatpush1.msra.mxu0 0.0
  %912 = vmatprep.mubr.f32.mxu0 %v776
  %913 = vmatmul.mubr.f32.gmra.mrb[0].mxu0 %v705
  %v914 = vpop.f32.mrb[0].mxu0
  %v915 = vadd.f32 %v845, %v914
  %v916 = vpop.f32.mrb[0].mxu0
  %917 = vdwg.mxu0
  %v919 = vsel %vm97, %v172, 0
  %921 = vmatprep.subr.mxu0 0.0
  %922 = vmatpush1.msra.mxu0 %v707
  %923 = vmatprep.subr.mxu0 0.0
  %924 = vmatpush1.msra.mxu0 %v708
  %925 = vmatprep.subr.mxu0 0.0
  %926 = vmatpush1.msra.mxu0 %v709
  %927 = vmatprep.subr.mxu0 0.0
  %928 = vmatpush1.msra.mxu0 %v710
  %929 = vmatprep.subr.mxu0 0.0
  %930 = vmatpush1.msra.mxu0 %v711
  %931 = vmatprep.subr.mxu0 0.0
  %932 = vmatpush1.msra.mxu0 %v712
  %933 = vmatprep.subr.mxu0 0.0
  %934 = vmatpush1.msra.mxu0 %v713
  %935 = vmatprep.subr.mxu0 0.0
  %936 = vmatpush1.msra.mxu0 %v714
  %937 = vmatprep.subr.mxu0 0.0
  %938 = vmatpush1.msra.mxu0 %v715
  %939 = vmatprep.subr.mxu0 0.0
  %940 = vmatpush1.msra.mxu0 %v716
  %941 = vmatprep.subr.mxu0 0.0
  %942 = vmatpush1.msra.mxu0 %v717
  %943 = vmatprep.subr.mxu0 0.0
  %944 = vmatpush1.msra.mxu0 %v718
  %945 = vmatprep.subr.mxu0 0.0
  %946 = vmatpush1.msra.mxu0 %v719
  %947 = vmatprep.subr.mxu0 0.0
  %948 = vmatpush1.msra.mxu0 %v720
  %949 = vmatprep.subr.mxu0 0.0
  %950 = vmatpush1.msra.mxu0 %v721
  %951 = vmatprep.subr.mxu0 0.0
  %952 = vmatpush1.msra.mxu0 %v722
  %953 = vmatprep.subr.mxu0 0.0
  %954 = vmatpush1.msra.mxu0 %v723
  %955 = vmatprep.subr.mxu0 0.0
  %956 = vmatpush1.msra.mxu0 %v724
  %957 = vmatprep.subr.mxu0 0.0
  %958 = vmatpush1.msra.mxu0 0.0
  %959 = vmatprep.subr.mxu0 0.0
  %960 = vmatpush1.msra.mxu0 0.0
  %961 = vmatprep.subr.mxu0 0.0
  %962 = vmatpush1.msra.mxu0 0.0
  %963 = vmatprep.subr.mxu0 0.0
  %964 = vmatpush1.msra.mxu0 0.0
  %965 = vmatprep.subr.mxu0 0.0
  %966 = vmatpush1.msra.mxu0 0.0
  %967 = vmatprep.subr.mxu0 0.0
  %968 = vmatpush1.msra.mxu0 0.0
  %969 = vmatprep.subr.mxu0 0.0
  %970 = vmatpush1.msra.mxu0 0.0
  %971 = vmatprep.subr.mxu0 0.0
  %972 = vmatpush1.msra.mxu0 0.0
  %973 = vmatprep.subr.mxu0 0.0
  %974 = vmatpush1.msra.mxu0 0.0
  %975 = vmatprep.subr.mxu0 0.0
  %976 = vmatpush1.msra.mxu0 0.0
  %977 = vmatprep.subr.mxu0 0.0
  %978 = vmatpush1.msra.mxu0 0.0
  %979 = vmatprep.subr.mxu0 0.0
  %980 = vmatpush1.msra.mxu0 0.0
  %981 = vmatprep.subr.mxu0 0.0
  %982 = vmatpush1.msra.mxu0 0.0
  %983 = vmatprep.subr.mxu0 0.0
  %984 = vmatpush1.msra.mxu0 0.0
  %985 = vmatprep.mubr.f32.mxu0 %v919
  %986 = vmatmul.mubr.f32.gmra.mrb[0].mxu0 %v171
  %v987 = vpop.f32.mrb[0].mxu0
  %v988 = vadd.f32 %v915, %v987
  %v989 = vpop.f32.mrb[0].mxu0
  %990 = vdwg.mxu0
  %v991 = vld [vmem:[%s10] sm:$0x1]
  %v993 = vlaneseq
  %v994 = vshrl.u32 %v993, 7
  %v995 = vsub.s32 0, %v994
  %v996 = vrot.slane %v991, %v995
  %v998 = vadd.f32 %v988, %v996
  %v999 = vld [vmem:[%s2] sm:$0x3]
  %v1000 = vld [vmem:[%s9] sm:$0x1]
  %1002 = vset.pattern.permute.xlu0 0
  %1003 = vperm.xlu0 %1002, %v999
  %v1004 = vpop.permute.xlu0 %1003
  %v1006 = vlaneseq
  %v1007 = vshrl.u32 %v1006, 7
  %v1008 = vsub.s32 0, %v1007
  %v1009 = vrot.slane %v1000, %v1008
  %v1010 = vmul.f32 %v1004, %v1009
  %v1011 = vadd.f32 %v998, %v1010
  %v1012 = vld [vmem:[%s9 + $0x1] sm:$0x1]
  %1013 = vset.pattern.permute.xlu0 1
  %1014 = vperm.xlu0 %1013, %v999
  %v1015 = vpop.permute.xlu0 %1014
  %v1017 = vlaneseq
  %v1018 = vshrl.u32 %v1017, 7
  %v1019 = vsub.s32 0, %v1018
  %v1020 = vrot.slane %v1012, %v1019
  %v1021 = vmul.f32 %v1015, %v1020
  %v1022 = vadd.f32 %v1011, %v1021
  %vm1023 = vcmask 222208
  %1024 = vst.msk [vmem:[%s11] sm:$0x3] %vm1023, %v1022
  // Predicated region
  $region46: #{dqn_track_forward.1} parent=0 // pred_check
    _
  $region47: #{dqn_track_forward.1} parent=0 // pred_check_branch
    %1026 = sbr.rel (0) target = $region49
  $region48: #{dqn_track_forward.1} parent=0 // pred_region
    _
  $region49: #{dqn_track_forward.1} parent=0 // pred_fallthru
    _
  // Predicated region
  $region50: #{dqn_track_forward.1} parent=0 // pred_check
    _
  $region51: #{dqn_track_forward.1} parent=0 // pred_check_branch
    %1028 = sbr.rel (0) target = $region53
  $region52: #{dqn_track_forward.1} parent=0 // pred_region
    _
  $region53: #{dqn_track_forward.1} parent=0 // pred_fallthru
    _

</llo_original>
